<compile_context>
chip_gen: v7x
topology: tpu7x:2x2x1
jax: 0.10.0
libtpu: 0.0.40
codegen_flags: <defaults>
</compile_context>

<pallas_src>
import functools

import jax
import jax.numpy as jnp
from jax import lax
from jax.experimental import pallas as pl
from jax.experimental.pallas import tpu as pltpu

LANE = 128  # lane width (last dim)


def _cdiv(a, b):
    return (a + b - 1) // b


def _round_up(a, b):
    return _cdiv(a, b) * b


@functools.lru_cache(maxsize=1)
def _hw_params():
    """(parallel cores, max tile rows, vmem_limit_bytes) per TPU generation."""
    kind = ""
    try:
        kind = jax.devices()[0].device_kind.lower()
    except Exception:  # defensive: fall back to conservative settings
        pass
    if "v7" in kind:
        # 2 TensorCores; 8192 rows = 4 MiB f32 per input per block -> 16 MiB of
        # double-buffered inputs per core, well under 64 MiB physical VMEM.
        return 2, 8192, 40 * 1024 * 1024
    if "v6" in kind:
        # single TC, 1.4 TB/s HBM: big blocks amortize the ~0.35us per-grid-step overhead.
        return 1, 8192, 48 * 1024 * 1024
    # v5e (16 MiB default scoped VMEM) and unknown chips: conservative defaults.
    return 1, 2048, None


def _bce_terms(x, y):
    """positive mask, numerically-stable unweighted BCE-with-logits, loss where y==1."""
    is_pos = y == 1.0
    pos = jnp.where(is_pos, 1.0, 0.0)
    # t = exp(-|x|) in (0, 1]: plain log(1 + t) is accurate enough here (the term is only
    # tiny when max(x, 0) already dominates) and avoids the compensated-log1p EUP divide.
    loss = jnp.maximum(x, 0.0) - x * y + jnp.log(1.0 + jnp.exp(-jnp.abs(x)))
    loss_pos = jnp.where(is_pos, loss, 0.0)
    return pos, loss, loss_pos


def _wbce_kernel(x_ref, y_ref, o_ref, *, rows, tile_r, bpc, n_blocks,
                 need_guard, has_ragged):
    """Accumulate per-lane partials [count(y==1), sum(loss), sum(loss | y==1)]
    into the VMEM-resident (24, 128) output block."""
    i = pl.program_id(0)   # parallel slice (TensorCore on v7x)
    j = pl.program_id(1)   # sequential row-block within the slice

    @pl.when(j == 0)
    def _():
        o_ref[...] = jnp.zeros_like(o_ref)

    g = i * bpc + j        # intended global row-block index
    row0 = g * tile_r

    def fold(v):  # (tile_r, 128) -> (8, 128): pure sublane-group adds, no cross-lane work
        return jnp.sum(v.reshape(tile_r // 8, 8, LANE), axis=0)

    def accumulate(pos, loss, loss_pos):
        o_ref[0:8, :] += fold(pos)
        o_ref[8:16, :] += fold(loss)
        o_ref[16:24, :] += fold(loss_pos)

    def body():
        # cast in-kernel: inputs arrive in their native dtype (f32/bf16/bool/int8 all ok)
        x = x_ref[...].astype(jnp.float32)
        y = y_ref[...].astype(jnp.float32)

        if not has_ragged:
            # every block is full: no masking anywhere on the hot path
            accumulate(*_bce_terms(x, y))
            return

        is_full = row0 + tile_r <= rows

        @pl.when(is_full)
        def _fast():  # unmasked fast path for full blocks
            accumulate(*_bce_terms(x, y))

        @pl.when(jnp.logical_not(is_full))
        def _tail():  # single ragged tail block: mask rows beyond `rows`
            valid = (lax.broadcasted_iota(jnp.int32, (tile_r, LANE), 0) + row0) < rows
            xv = jnp.where(valid, x, 0.0)
            yv = jnp.where(valid, y, -1.0)   # -1: neither positive nor negative
            pos, loss, loss_pos = _bce_terms(xv, yv)
            accumulate(pos, jnp.where(valid, loss, 0.0), loss_pos)

    if need_guard:
        # uneven megacore split: skip clamped duplicate blocks entirely
        pl.when(g < n_blocks)(body)
    else:
        body()


@jax.jit
def weighted_bce_with_logits_loss(logits, target):
    """logits, target: same shape (e.g. NCHW). Returns scalar mean loss (float32)."""
    assert logits.shape == target.shape
    numel = logits.size
    ncores, max_tile_r, vmem_limit = _hw_params()

    x = logits.reshape(-1)
    y = target.reshape(-1)

    rows = numel // LANE
    tail = numel - rows * LANE

    # ---------- bulk of the data: one fused Pallas pass over a (rows, 128) view ----------
    if rows > 0:
        if tail:
            # rare ragged case: one head materialization (XLA slice) is unavoidable here.
            x_head = lax.slice(x, (0,), (rows * LANE,))
            y_head = lax.slice(y, (0,), (rows * LANE,))
        else:
            x_head, y_head = x, y   # zero-copy view for the common numel % 128 == 0 case
        x2 = x_head.reshape(rows, LANE)
        y2 = y_head.reshape(rows, LANE)

        tile_r = min(max_tile_r, _round_up(rows, 8))
        n_blocks = _cdiv(rows, tile_r)
        ncores_eff = min(ncores, n_blocks)           # no duplicate work for tiny inputs
        bpc = _cdiv(n_blocks, ncores_eff)            # row-blocks per parallel slice
        need_guard = ncores_eff * bpc != n_blocks    # uneven split -> clamped duplicates
        has_ragged = n_blocks * tile_r != rows       # last block has masked rows

        def in_map(i, j):
            # clamp so the DMA never walks past the array; duplicates are skipped in-kernel
            return (jnp.minimum(i * bpc + j, n_blocks - 1), 0)

        kernel = functools.partial(
            _wbce_kernel, rows=rows, tile_r=tile_r, bpc=bpc, n_blocks=n_blocks,
            need_guard=need_guard, has_ragged=has_ragged)

        partials = pl.pallas_call(
            kernel,
            out_shape=jax.ShapeDtypeStruct((ncores_eff, 24, LANE), jnp.float32),
            grid=(ncores_eff, bpc),
            in_specs=[
                pl.BlockSpec((tile_r, LANE), in_map),
                pl.BlockSpec((tile_r, LANE), in_map),
            ],
            out_specs=pl.BlockSpec((None, 24, LANE), lambda i, j: (i, 0, 0)),
            compiler_params=pltpu.CompilerParams(
                dimension_semantics=("parallel", "arbitrary"),
                vmem_limit_bytes=vmem_limit),
        )(x2, y2)

        # tiny final cross-core / cross-lane reduction in plain JAX
        parts = jnp.sum(partials.reshape(ncores_eff, 3, 8, LANE), axis=(0, 2, 3))
        P, sum_total, sum_pos = parts[0], parts[1], parts[2]
    else:
        P = sum_total = sum_pos = jnp.float32(0.0)

    # ---------- sub-128-element remainder: reduced in plain JAX (no full-array pad) ------
    if tail:
        x_t = lax.slice(x, (rows * LANE,), (numel,)).astype(jnp.float32)
        y_t = lax.slice(y, (rows * LANE,), (numel,)).astype(jnp.float32)
        loss_t = jnp.maximum(x_t, 0.0) - x_t * y_t + jnp.log1p(jnp.exp(-jnp.abs(x_t)))
        P = P + jnp.sum(y_t == 1.0).astype(jnp.float32)
        sum_total = sum_total + jnp.sum(loss_t)
        sum_pos = sum_pos + jnp.sum(jnp.where(y_t == 1.0, loss_t, 0.0))

    # strictly-binary targets assumed (same assumption the PyTorch module already makes):
    N = jnp.float32(numel) - P
    sum_neg = sum_total - sum_pos

    beta_p = (P + N) / (P + 1.0)
    beta_n = (P + N) / N   # NOTE: inf/nan if the batch has no negatives (matches the module)
    return (beta_p * sum_pos + beta_n * sum_neg) / jnp.float32(numel)


def _reference_loss(logits, target):
    """Pure-JAX reference mirroring the PyTorch module."""
    x = logits.astype(jnp.float32)
    y = target.astype(jnp.float32)
    P = jnp.sum(y == 1.0).astype(jnp.float32)
    N = jnp.sum(y == 0.0).astype(jnp.float32)
    beta_p = (P + N) / (P + 1.0)
    beta_n = (P + N) / N
    w = jnp.where(y == 1.0, beta_p, beta_n)
    loss = jnp.maximum(x, 0.0) - x * y + jnp.log1p(jnp.exp(-jnp.abs(x)))
    return jnp.mean(w * loss)


if __name__ == "__main__":
    key = jax.random.PRNGKey(0)
    k1, k2 = jax.random.split(key)

    # NCHW logits / binary targets, as the CXR multi-label head would produce.
    shape = (2, 4, 16, 16)
    logits = jax.random.normal(k1, shape, dtype=jnp.float32)
    target = jax.random.bernoulli(k2, p=0.3, shape=shape).astype(jnp.float32)

    out = jax.block_until_ready(weighted_bce_with_logits_loss(logits, target))
    ref = jax.block_until_ready(_reference_loss(logits, target))
    assert jnp.allclose(out, ref, rtol=1e-5, atol=1e-5), (out, ref)

    print("KERNEL_OK")
</pallas_src>

<mosaic_0001>
module attributes {stable_mosaic.version = 11 : i64} {
  func.func @_wbce_kernel(%arg0: i32, %arg1: i32, %arg2: memref<16x128xf32, #tpu.memory_space<vmem>>, %arg3: memref<16x128xf32, #tpu.memory_space<vmem>>, %arg4: memref<1x24x128xf32, #tpu.memory_space<vmem>>) attributes {dimension_semantics = [#tpu.dimension_semantics<parallel>, #tpu.dimension_semantics<arbitrary>], iteration_bounds = array<i64: 1, 1>, scalar_prefetch = 0 : i64, scratch_operands = 0 : i64, tpu.core_type = #tpu.core_type<tc>, window_params = [{transform_indices = @transform_0, window_bounds = array<i64: 16, 128>}, {transform_indices = @transform_1, window_bounds = array<i64: 16, 128>}, {transform_indices = @transform_2, window_bounds = array<i64: 1, 24, 128>}]} {
    %c0_i32 = arith.constant 0 : i32
    %0 = arith.cmpi eq, %arg1, %c0_i32 : i32
    %1 = arith.extui %0 : i1 to i32
    %c0_i32_0 = arith.constant 0 : i32
    %2 = arith.cmpi ne, %1, %c0_i32_0 : i32
    scf.if %2 {
      %cst_29 = arith.constant 0.000000e+00 : f32
      %48 = vector.broadcast %cst_29 : f32 to vector<24x128xf32>
      %c0_30 = arith.constant 0 : index
      %c0_31 = arith.constant 0 : index
      %c0_32 = arith.constant 0 : index
      %49 = vector.load %arg4[%c0_30, %c0_31, %c0_32] : memref<1x24x128xf32, #tpu.memory_space<vmem>>, vector<1x24x128xf32>
      %50 = vector.shape_cast %49 : vector<1x24x128xf32> to vector<24x128xf32>
      %51 = vector.shape_cast %48 : vector<24x128xf32> to vector<1x24x128xf32>
      tpu.vector_store %arg4[%c0_30, %c0_31, %c0_32], %51 {strides = array<i32>} : memref<1x24x128xf32, #tpu.memory_space<vmem>>, vector<1x24x128xf32>,
    } else {
    }
    %c0 = arith.constant 0 : index
    %c0_1 = arith.constant 0 : index
    %3 = vector.load %arg2[%c0, %c0_1] : memref<16x128xf32, #tpu.memory_space<vmem>>, vector<16x128xf32>
    %c0_2 = arith.constant 0 : index
    %c0_3 = arith.constant 0 : index
    %4 = vector.load %arg3[%c0_2, %c0_3] : memref<16x128xf32, #tpu.memory_space<vmem>>, vector<16x128xf32>
    %cst = arith.constant 1.000000e+00 : f32
    %5 = vector.broadcast %cst : f32 to vector<16x128xf32>
    %6 = arith.cmpf oeq, %4, %5 : vector<16x128xf32>
    %cst_4 = arith.constant 1.000000e+00 : f32
    %cst_5 = arith.constant 0.000000e+00 : f32
    %7 = vector.broadcast %cst_4 : f32 to vector<16x128xf32>
    %8 = vector.broadcast %cst_5 : f32 to vector<16x128xf32>
    %9 = arith.select %6, %7, %8 : vector<16x128xi1>, vector<16x128xf32>
    %cst_6 = arith.constant 0.000000e+00 : f32
    %10 = vector.broadcast %cst_6 : f32 to vector<16x128xf32>
    %11 = arith.maximumf %3, %10 : vector<16x128xf32>
    %12 = arith.mulf %3, %4 : vector<16x128xf32>
    %13 = arith.subf %11, %12 : vector<16x128xf32>
    %14 = math.absf %3 : vector<16x128xf32>
    %cst_7 = arith.constant 0.000000e+00 : f32
    %15 = vector.broadcast %cst_7 : f32 to vector<16x128xf32>
    %16 = arith.subf %15, %14 : vector<16x128xf32>
    %17 = math.exp %16 : vector<16x128xf32>
    %cst_8 = arith.constant 1.000000e+00 : f32
    %18 = vector.broadcast %cst_8 : f32 to vector<16x128xf32>
    %19 = arith.addf %18, %17 : vector<16x128xf32>
    %20 = math.log %19 : vector<16x128xf32>
    %21 = arith.addf %13, %20 : vector<16x128xf32>
    %cst_9 = arith.constant 0.000000e+00 : f32
    %22 = vector.broadcast %cst_9 : f32 to vector<16x128xf32>
    %23 = arith.select %6, %21, %22 : vector<16x128xi1>, vector<16x128xf32>
    %c0_10 = arith.constant 0 : index
    %c0_11 = arith.constant 0 : index
    %c0_12 = arith.constant 0 : index
    %24 = vector.load %arg4[%c0_10, %c0_11, %c0_12] : memref<1x24x128xf32, #tpu.memory_space<vmem>>, vector<1x8x128xf32>
    %25 = vector.shape_cast %24 : vector<1x8x128xf32> to vector<8x128xf32>
    %26 = vector.shape_cast %9 : vector<16x128xf32> to vector<2x8x128xf32>
    %cst_13 = arith.constant dense<0.000000e+00> : vector<8x128xf32>
    %27 = vector.multi_reduction <add>, %26, %cst_13 [0] : vector<2x8x128xf32> to vector<8x128xf32>
    %28 = arith.addf %25, %27 : vector<8x128xf32>
    %c0_14 = arith.constant 0 : index
    %c0_15 = arith.constant 0 : index
    %c0_16 = arith.constant 0 : index
    %29 = vector.load %arg4[%c0_14, %c0_15, %c0_16] : memref<1x24x128xf32, #tpu.memory_space<vmem>>, vector<1x8x128xf32>
    %30 = vector.shape_cast %29 : vector<1x8x128xf32> to vector<8x128xf32>
    %31 = vector.shape_cast %28 : vector<8x128xf32> to vector<1x8x128xf32>
    tpu.vector_store %arg4[%c0_14, %c0_15, %c0_16], %31 {strides = array<i32>} : memref<1x24x128xf32, #tpu.memory_space<vmem>>, vector<1x8x128xf32>,
    %c0_17 = arith.constant 0 : index
    %c8 = arith.constant 8 : index
    %c0_18 = arith.constant 0 : index
    %32 = vector.load %arg4[%c0_17, %c8, %c0_18] : memref<1x24x128xf32, #tpu.memory_space<vmem>>, vector<1x8x128xf32>
    %33 = vector.shape_cast %32 : vector<1x8x128xf32> to vector<8x128xf32>
    %34 = vector.shape_cast %21 : vector<16x128xf32> to vector<2x8x128xf32>
    %cst_19 = arith.constant dense<0.000000e+00> : vector<8x128xf32>
    %35 = vector.multi_reduction <add>, %34, %cst_19 [0] : vector<2x8x128xf32> to vector<8x128xf32>
    %36 = arith.addf %33, %35 : vector<8x128xf32>
    %c0_20 = arith.constant 0 : index
    %c8_21 = arith.constant 8 : index
    %c0_22 = arith.constant 0 : index
    %37 = vector.load %arg4[%c0_20, %c8_21, %c0_22] : memref<1x24x128xf32, #tpu.memory_space<vmem>>, vector<1x8x128xf32>
    %38 = vector.shape_cast %37 : vector<1x8x128xf32> to vector<8x128xf32>
    %39 = vector.shape_cast %36 : vector<8x128xf32> to vector<1x8x128xf32>
    tpu.vector_store %arg4[%c0_20, %c8_21, %c0_22], %39 {strides = array<i32>} : memref<1x24x128xf32, #tpu.memory_space<vmem>>, vector<1x8x128xf32>,
    %c0_23 = arith.constant 0 : index
    %c16 = arith.constant 16 : index
    %c0_24 = arith.constant 0 : index
    %40 = vector.load %arg4[%c0_23, %c16, %c0_24] : memref<1x24x128xf32, #tpu.memory_space<vmem>>, vector<1x8x128xf32>
    %41 = vector.shape_cast %40 : vector<1x8x128xf32> to vector<8x128xf32>
    %42 = vector.shape_cast %23 : vector<16x128xf32> to vector<2x8x128xf32>
    %cst_25 = arith.constant dense<0.000000e+00> : vector<8x128xf32>
    %43 = vector.multi_reduction <add>, %42, %cst_25 [0] : vector<2x8x128xf32> to vector<8x128xf32>
    %44 = arith.addf %41, %43 : vector<8x128xf32>
    %c0_26 = arith.constant 0 : index
    %c16_27 = arith.constant 16 : index
    %c0_28 = arith.constant 0 : index
    %45 = vector.load %arg4[%c0_26, %c16_27, %c0_28] : memref<1x24x128xf32, #tpu.memory_space<vmem>>, vector<1x8x128xf32>
    %46 = vector.shape_cast %45 : vector<1x8x128xf32> to vector<8x128xf32>
    %47 = vector.shape_cast %44 : vector<8x128xf32> to vector<1x8x128xf32>
    tpu.vector_store %arg4[%c0_26, %c16_27, %c0_28], %47 {strides = array<i32>} : memref<1x24x128xf32, #tpu.memory_space<vmem>>, vector<1x8x128xf32>,
    return
  }
  func.func @transform_0(%arg0: i32, %arg1: i32) -> (i32, i32) {
    %c1_i32 = arith.constant 1 : i32
    %0 = arith.muli %arg0, %c1_i32 : i32
    %1 = arith.addi %0, %arg1 : i32
    %c0_i32 = arith.constant 0 : i32
    %2 = arith.minsi %1, %c0_i32 : i32
    %c0_i32_0 = arith.constant 0 : i32
    %c0_i32_1 = arith.constant 0 : i32
    return %2, %c0_i32_0 : i32, i32
  }
  func.func @transform_1(%arg0: i32, %arg1: i32) -> (i32, i32) {
    %c1_i32 = arith.constant 1 : i32
    %0 = arith.muli %arg0, %c1_i32 : i32
    %1 = arith.addi %0, %arg1 : i32
    %c0_i32 = arith.constant 0 : i32
    %2 = arith.minsi %1, %c0_i32 : i32
    %c0_i32_0 = arith.constant 0 : i32
    %c0_i32_1 = arith.constant 0 : i32
    return %2, %c0_i32_0 : i32, i32
  }
  func.func @transform_2(%arg0: i32, %arg1: i32) -> (i32, i32, i32) {
    %c0_i32 = arith.constant 0 : i32
    %c0_i32_0 = arith.constant 0 : i32
    %c0_i32_1 = arith.constant 0 : i32
    return %arg0, %c0_i32, %c0_i32_0 : i32, i32, i32
  }
}

</mosaic_0001>

<llo_original>
// kernel: weighted_bce_with_logits_loss.1
$region0: #{weighted_bce_with_logits_loss.1}
  #allocation0 [shape = 'u32[]', space=smem, size = 0x4, offset = 0x4, fixed_abs, tag = 'smem constant byte address 0x4 - core index']
  #allocation1 [shape = 'u32[144,128]{1,0:T(1,128)}', space=vmem, size = 0x12000, scoped, tag = 'internal scratch']
  %s0 = inlined_call_operand.vmem [shape: f32[16,128], index: 0, kind: input, shape index: {}]
  %s1 = inlined_call_operand.vmem [shape: f32[16,128], index: 1, kind: input, shape index: {}]
  %s2 = inlined_call_operand.vmem [shape: f32[1,24,128], index: 2, kind: output, shape index: {}]
  %s3 = sld [smem:[#allocation0]]
  $region22: #{weighted_bce_with_logits_loss.1} parent=0
    _
  %s5 = ssub.s32 1, %s3
  %s6 = scalar_select 0, %s5, %s3
  // Predicated region
  $region2: #{weighted_bce_with_logits_loss.1} parent=0 // pred_check
    _
  $region3: #{weighted_bce_with_logits_loss.1} parent=0 // pred_check_branch
    %8 = sbr.rel (0) target = $region5
  $region4: #{weighted_bce_with_logits_loss.1} parent=0 // pred_region
    %s9 = sadd.s32 0, 0
    %p10 = scmp.lt.s32.totalorder %s9, 0
    %s11 = scalar_select %p10, %s9, 0
    %s12 = smul.u32 2, %s11
    %p13 = scmp.lt.s32.totalorder %s12, 1
    %s14 = scalar_select %p13, %s12, 1
    %s15 = smul.addr %s14, 8
    %s16 = scalar_lea.vmem %s0, %s15
    %s17 = sadd.s32 0, 0
    %p18 = scmp.lt.s32.totalorder %s17, 0
    %s19 = scalar_select %p18, %s17, 0
    %s20 = smul.u32 2, %s19
  $region5: #{weighted_bce_with_logits_loss.1} parent=0 // pred_fallthru
    _
  // Predicated region
  $region6: #{weighted_bce_with_logits_loss.1} parent=0 // pred_check
    _
  $region7: #{weighted_bce_with_logits_loss.1} parent=0 // pred_check_branch
    %22 = sbr.rel (0) target = $region9
  $region8: #{weighted_bce_with_logits_loss.1} parent=0 // pred_region
    %s23 = sadd.s32 0, 0
    %p24 = scmp.lt.s32.totalorder %s23, 0
    %s25 = scalar_select %p24, %s23, 0
    %s26 = smul.u32 2, %s25
    %p27 = scmp.lt.s32.totalorder %s26, 1
    %s28 = scalar_select %p27, %s26, 1
    %s29 = smul.addr %s28, 8
    %s30 = scalar_lea.vmem %s1, %s29
    %s31 = sadd.s32 0, 0
    %p32 = scmp.lt.s32.totalorder %s31, 0
    %s33 = scalar_select %p32, %s31, 0
    %s34 = smul.u32 2, %s33
  $region9: #{weighted_bce_with_logits_loss.1} parent=0 // pred_fallthru
    _
  %s35 = sadd.s32 0, 0
  %p36 = scmp.lt.s32.totalorder %s35, 0
  %s37 = scalar_select %p36, %s35, 0
  %s38 = smul.u32 2, %s37
  %p39 = scmp.lt.s32.totalorder %s38, 1
  %s40 = scalar_select %p39, %s38, 1
  %s41 = smul.addr %s40, 8
  %s42 = scalar_lea.vmem %s0, %s41
  %s43 = sadd.s32 0, 0
  %p44 = scmp.lt.s32.totalorder %s43, 0
  %s45 = scalar_select %p44, %s43, 0
  %s46 = smul.u32 2, %s45
  %p47 = scmp.lt.s32.totalorder %s46, 1
  %s48 = scalar_select %p47, %s46, 1
  %s49 = smul.addr %s48, 8
  %s50 = scalar_lea.vmem %s1, %s49
  %s51 = sadd.s32 0, 0
  %p52 = scmp.lt.s32.totalorder %s51, 0
  %s53 = scalar_select %p52, %s51, 0
  %s54 = smul.u32 2, %s53
  %p55 = scmp.lt.s32.totalorder %s54, 1
  %s56 = scalar_select %p55, %s54, 1
  %s57 = smul.addr %s56, 8
  %s58 = scalar_lea.vmem %s0, %s57
  %s59 = sadd.s32 0, 0
  %p60 = scmp.lt.s32.totalorder %s59, 0
  %s61 = scalar_select %p60, %s59, 0
  %s62 = smul.u32 2, %s61
  %s63 = sadd.s32 0, 0
  %p64 = scmp.lt.s32.totalorder %s63, 0
  %s65 = scalar_select %p64, %s63, 0
  %s66 = smul.u32 2, %s65
  %p67 = scmp.lt.s32.totalorder %s66, 1
  %s68 = scalar_select %p67, %s66, 1
  %s69 = smul.addr %s68, 8
  %s70 = scalar_lea.vmem %s1, %s69
  %s71 = sadd.s32 0, 0
  %p72 = scmp.lt.s32.totalorder %s71, 0
  %s73 = scalar_select %p72, %s71, 0
  %s74 = smul.u32 2, %s73
  %p75 = scmp.eq.s32.totalorder 0, 0
  // Predicated region
  $region10: #{weighted_bce_with_logits_loss.1} parent=0 // pred_check
    %p76 = pneg %p75
  $region11: #{weighted_bce_with_logits_loss.1} parent=0 // pred_check_branch
    %78 = sbr.rel (%p76) target = $region13
  $region12: #{weighted_bce_with_logits_loss.1} parent=0 // pred_region
    %79 = vst [vmem:[%s2] sm:$0xff] 0.0
    %80 = vst [vmem:[%s2 + $0x8] sm:$0xff] 0.0
    %81 = vst [vmem:[%s2 + $0x10] sm:$0xff] 0.0
  $region13: #{weighted_bce_with_logits_loss.1} parent=0 // pred_fallthru
    _
  %v82 = vld [vmem:[%s58] sm:$0xff]
  %v83 = vld [vmem:[%s58 + $0x8] sm:$0xff]
  %v84 = vld [vmem:[%s70] sm:$0xff]
  %v85 = vld [vmem:[%s70 + $0x8] sm:$0xff]
  %vm86 = vcmp.eq.f32.partialorder %v84, 1.0
  %vm87 = vcmp.eq.f32.partialorder %v85, 1.0
  %v88 = vsel %vm86, 1.0, 0.0
  %v89 = vsel %vm87, 1.0, 0.0
  %v90 = vmax.f32 %v82, 0.0
  %v91 = vmax.f32 %v83, 0.0
  %v92 = vmul.f32 %v82, %v84
  %v93 = vmul.f32 %v83, %v85
  %v94 = vsub.f32 %v90, %v92
  %v95 = vsub.f32 %v91, %v93
  %v96 = vand.u32 2147483647, %v82
  %v97 = vand.u32 2147483647, %v83
  %v98 = vsub.f32 0.0, %v96
  %v99 = vsub.f32 0.0, %v97
  %v100 = vmul.f32 %v98, 1.442695
  %v101 = vpow.pop %v100
  %v102 = vmul.f32 %v99, 1.442695
  %v103 = vpow.pop %v102
  %v104 = vadd.f32 %v101, 1.0
  %v105 = vadd.f32 %v103, 1.0
  %v106 = vlog2.pop %v104
  %v107 = vmul.f32 %v106, 0.6931472
  %v108 = vlog2.pop %v105
  %v109 = vmul.f32 %v108, 0.6931472
  %v110 = vadd.f32 %v94, %v107
  %v111 = vadd.f32 %v95, %v109
  %v112 = vsel %vm86, %v110, 0.0
  %v113 = vsel %vm87, %v111, 0.0
  %v114 = vld [vmem:[%s2] sm:$0xff]
  %v115 = vadd.f32 %v88, %v89
  %v116 = vadd.f32 %v114, %v115
  %117 = vst [vmem:[%s2] sm:$0xff] %v116
  %v118 = vld [vmem:[%s2 + $0x8] sm:$0xff]
  %v119 = vadd.f32 %v110, %v111
  %v120 = vadd.f32 %v118, %v119
  %121 = vst [vmem:[%s2 + $0x8] sm:$0xff] %v120
  %v122 = vld [vmem:[%s2 + $0x10] sm:$0xff]
  %v123 = vadd.f32 %v112, %v113
  %v124 = vadd.f32 %v122, %v123
  %125 = vst [vmem:[%s2 + $0x10] sm:$0xff] %v124
  // Predicated region
  $region14: #{weighted_bce_with_logits_loss.1} parent=0 // pred_check
    _
  $region15: #{weighted_bce_with_logits_loss.1} parent=0 // pred_check_branch
    %127 = sbr.rel (0) target = $region17
  $region16: #{weighted_bce_with_logits_loss.1} parent=0 // pred_region
    _
  $region17: #{weighted_bce_with_logits_loss.1} parent=0 // pred_fallthru
    _
  // Predicated region
  $region18: #{weighted_bce_with_logits_loss.1} parent=0 // pred_check
    _
  $region19: #{weighted_bce_with_logits_loss.1} parent=0 // pred_check_branch
    %129 = sbr.rel (0) target = $region21
  $region20: #{weighted_bce_with_logits_loss.1} parent=0 // pred_region
    _
  $region21: #{weighted_bce_with_logits_loss.1} parent=0 // pred_fallthru
    _

</llo_original>
